<compile_context>
chip_gen: v6e
topology: v6e:2x2x1
jax: 0.10.0
libtpu: 0.0.40
codegen_flags: <defaults>
</compile_context>

<pallas_src>
import functools

import jax
import jax.numpy as jnp
from jax import lax
from jax.experimental import pallas as pl
from jax.experimental.pallas import tpu as pltpu

NEG_SLOPE = 0.01  # PyTorch F.leaky_relu default negative slope


def _leaky_relu(x):
    return jnp.where(x > 0, x, NEG_SLOPE * x)


def _log1p_pos(x):
    # log1p for x >= 0 built only from ops that always lower in Mosaic; the
    # series branch keeps full precision for tiny x (review: log vs log1p).
    return jnp.where(x < 1e-4, x * (1.0 - 0.5 * x), jnp.log(1.0 + x))


def _linear_T(x_f32, w_ref, b_ref):
    """x @ W^T + b with W kept in PyTorch (out, in) layout.

    bf16 MXU operands, f32 accumulation; the transpose lives in
    dimension_numbers (contract axis 1 of both operands), not in HBM.
    """
    y = lax.dot_general(
        x_f32.astype(jnp.bfloat16), w_ref[...],
        dimension_numbers=(((1,), (1,)), ((), ())),
        preferred_element_type=jnp.float32)
    return y + b_ref[...]


def _dempar_disc_kernel(emb_ref, labels_ref,
                        w1_ref, b1_ref, w2_ref, b2_ref, w3_ref, b3_ref,
                        w4_ref, b4_ref, wts_ref,
                        out_ref, acc_ref, *, tile_n, n_valid, n_pad):
    i = pl.program_id(0)

    @pl.when(i == 0)
    def _init():
        acc_ref[...] = jnp.zeros_like(acc_ref)

    # --- 4-layer MLP on this batch tile (bf16 MXU operands, f32 accumulate) --
    x = emb_ref[...]                                              # (T, D) bf16
    h1 = _leaky_relu(
        lax.dot_general(x, w1_ref[...],
                        dimension_numbers=(((1,), (1,)), ((), ())),
                        preferred_element_type=jnp.float32) + b1_ref[...])
    h2 = _leaky_relu(_linear_T(h1, w2_ref, b2_ref))               # (T, D)
    h3 = _leaky_relu(_linear_T(h2, w3_ref, b3_ref))               # (T, D/2)
    # Final layer: lane-width-1 output -> VPU multiply + lane reduce instead of
    # a wasted MXU pass.  w4 stays f32 on the elementwise path.
    scores = jnp.sum(h3 * w4_ref[...], axis=-1, keepdims=True) + b4_ref[...]

    # --- weighted BCE-with-logits (same broadcast semantics as the PyTorch
    #     F.binary_cross_entropy_with_logits(scores, labels, weight=(1,2))) ---
    y = labels_ref[...]                                           # (T, 1) f32
    # stable: max(s, 0) - s*y + log1p(exp(-|s|))
    l = (jnp.maximum(scores, 0.0) - scores * y
         + _log1p_pos(jnp.exp(-jnp.abs(scores))))                 # (T, 1)
    weighted = l * wts_ref[...]                                   # (T, 2)

    if n_pad != n_valid:  # mask rows that only exist because of tile padding
        row = i * tile_n + lax.broadcasted_iota(jnp.int32, (tile_n, 1), 0)
        weighted = jnp.where(row < n_valid, weighted, 0.0)

    acc_ref[...] += jnp.sum(weighted, keepdims=True)              # (1, 1)

    @pl.when(i == pl.num_programs(0) - 1)
    def _finalize():
        out_ref[...] = acc_ref[...] * (1.0 / (2.0 * n_valid))     # mean over 2N


def dempar_disc_forward(ents_emb, params, a_labels, bce_weights, *, tile_n=512):
    """ents_emb: (N, D) f32; a_labels: (N, 1) f32; bce_weights: (1, 2) f32."""
    (w1, b1), (w2, b2), (w3, b3), (w4, b4) = params
    n, d = ents_emb.shape
    d2 = w1.shape[0]
    dh = w3.shape[0]

    # Batch tile: multiple of 8 sublanes; don't over-pad tiny batches.
    # NOTE(v7x): re-derive tile_n so 2 buffers of (tile_n x (D + 2D + D + D/2
    # + 1)) activations plus the resident weights stay well under the scoped
    # VMEM default (v7x has 64 MiB physical per TC vs 128 MiB on v5e/v6e).
    tile_n = max(8, min(int(tile_n), pl.cdiv(n, 8) * 8))
    tile_n = (tile_n // 8) * 8
    n_pad = pl.cdiv(n, tile_n) * tile_n
    num_tiles = n_pad // tile_n
    pad = n_pad - n

    emb = jnp.pad(ents_emb.astype(jnp.bfloat16), ((0, pad), (0, 0)))
    labels = jnp.pad(a_labels.astype(jnp.float32), ((0, pad), (0, 0)))

    args = (
        emb, labels,
        w1.astype(jnp.bfloat16), b1.reshape(1, -1).astype(jnp.float32),
        w2.astype(jnp.bfloat16), b2.reshape(1, -1).astype(jnp.float32),
        w3.astype(jnp.bfloat16), b3.reshape(1, -1).astype(jnp.float32),
        w4.reshape(1, -1).astype(jnp.float32),   # used on the VPU -> keep f32
        b4.reshape(1, -1).astype(jnp.float32),
        bce_weights.astype(jnp.float32),
    )

    tiled = lambda shape: pl.BlockSpec(shape, lambda i: (i, 0))
    resident = lambda shape: pl.BlockSpec(shape, lambda i: (0, 0))

    in_specs = [
        tiled((tile_n, d)),                       # embeddings (pipelined)
        tiled((tile_n, 1)),                       # labels     (pipelined)
        resident((d2, d)), resident((1, d2)),     # W1, b1 (VMEM-resident)
        resident((d, d2)), resident((1, d)),      # W2, b2
        resident((dh, d)), resident((1, dh)),     # W3, b3
        resident((1, dh)), resident((1, 1)),      # W4 row, b4
        resident((1, 2)),                         # BCE class weights
    ]

    kernel = functools.partial(_dempar_disc_kernel,
                               tile_n=tile_n, n_valid=n, n_pad=n_pad)
    out = pl.pallas_call(
        kernel,
        out_shape=jax.ShapeDtypeStruct((1, 1), jnp.float32),
        grid=(num_tiles,),
        in_specs=in_specs,
        out_specs=pl.BlockSpec((1, 1), lambda i: (0, 0)),
        scratch_shapes=[pltpu.VMEM((1, 1), jnp.float32)],
        compiler_params=pltpu.CompilerParams(
            # The grid axis reduces into the scratch accumulator -> arbitrary.
            dimension_semantics=("arbitrary",)),
    )(*args)
    return out[0, 0]


def init_params(key, embed_dim):
    """Deterministic xavier-normal-ish init matching nn.Linear (out, in) shapes."""
    dims = [
        (2 * embed_dim, embed_dim),          # W1: (out, in)
        (embed_dim, 2 * embed_dim),          # W2
        (embed_dim // 2, embed_dim),         # W3
        (1, embed_dim // 2),                 # W4
    ]
    params = []
    for out_d, in_d in dims:
        key, kw, kb = jax.random.split(key, 3)
        scale = jnp.sqrt(2.0 / (in_d + out_d))
        w = jax.random.normal(kw, (out_d, in_d), jnp.float32) * scale
        b = jax.random.normal(kb, (out_d,), jnp.float32) * 0.01
        params.append((w, b))
    return params


def reference_forward(ents_emb, params, a_labels, bce_weights):
    """Pure-JAX reference with the same bf16-operand / f32-accumulate matmuls."""
    (w1, b1), (w2, b2), (w3, b3), (w4, b4) = params
    lin = lambda x, w, b: jnp.dot(x.astype(jnp.bfloat16),
                                  w.astype(jnp.bfloat16).T,
                                  preferred_element_type=jnp.float32) + b
    h1 = _leaky_relu(lin(ents_emb, w1, b1))
    h2 = _leaky_relu(lin(h1, w2, b2))
    h3 = _leaky_relu(lin(h2, w3, b3))
    s = jnp.sum(h3 * w4, axis=-1, keepdims=True) + b4
    l = jnp.maximum(s, 0.0) - s * a_labels + jnp.log1p(jnp.exp(-jnp.abs(s)))
    return jnp.mean(l * bce_weights)


if __name__ == "__main__":
    key = jax.random.PRNGKey(0)

    embed_dim = 32          # layers 32 -> 64 -> 32 -> 16 -> 1
    n_ents_total = 50       # size of the synthetic attribute matrix
    batch = 20              # entities in the forward pass (padded to 24 = 3 tiles of 8)
    a_idx = jnp.array([0], dtype=jnp.int32)   # single sensitive attribute column

    key, k_emb, k_attr, k_ents, k_params = jax.random.split(key, 5)

    # Synthetic stand-ins for attribute_data (no pickle/json loading).
    attr_mat = (jax.random.uniform(k_attr, (n_ents_total, 5)) > 0.5).astype(jnp.float32)
    ents = jax.random.randint(k_ents, (batch,), 0, n_ents_total)
    ents_emb = jax.random.normal(k_emb, (batch, embed_dim), jnp.float32)

    # Glue (the PyTorch attr_mat[ents][:, a_idx] indexing): plain JAX outside the kernel.
    a_labels = attr_mat[ents][:, a_idx]                      # (batch, 1)

    # Deterministic sensitive_weight surrogate -> weights = (1 - s, s).
    sensitive_weight = 0.7
    bce_weights = jnp.array([[1.0 - sensitive_weight, sensitive_weight]], jnp.float32)

    params = init_params(k_params, embed_dim)

    # tile_n=8 at this toy batch exercises the grid + padded-row masking path;
    # the default (512) is the realistic-batch tile size.
    fair_penalty = dempar_disc_forward(ents_emb, params, a_labels, bce_weights,
                                       tile_n=8)
    fair_penalty = jax.block_until_ready(fair_penalty)

    ref = reference_forward(ents_emb, params, a_labels, bce_weights)
    assert jnp.allclose(fair_penalty, ref, atol=2e-3, rtol=2e-3), (fair_penalty, ref)

    print("KERNEL_OK")
</pallas_src>

<mosaic_0001>
module attributes {stable_mosaic.version = 11 : i64} {
  func.func @_dempar_disc_kernel(%arg0: i32, %arg1: memref<8x32xbf16, #tpu.memory_space<vmem>>, %arg2: memref<8x1xf32, #tpu.memory_space<vmem>>, %arg3: memref<64x32xbf16, #tpu.memory_space<vmem>>, %arg4: memref<1x64xf32, #tpu.memory_space<vmem>>, %arg5: memref<32x64xbf16, #tpu.memory_space<vmem>>, %arg6: memref<1x32xf32, #tpu.memory_space<vmem>>, %arg7: memref<16x32xbf16, #tpu.memory_space<vmem>>, %arg8: memref<1x16xf32, #tpu.memory_space<vmem>>, %arg9: memref<1x16xf32, #tpu.memory_space<vmem>>, %arg10: memref<1x1xf32, #tpu.memory_space<vmem>>, %arg11: memref<1x2xf32, #tpu.memory_space<vmem>>, %arg12: memref<1x1xf32, #tpu.memory_space<vmem>>, %arg13: memref<1x1xf32, #tpu.memory_space<vmem>>) attributes {dimension_semantics = [#tpu.dimension_semantics<arbitrary>], iteration_bounds = array<i64: 3>, scalar_prefetch = 0 : i64, scratch_operands = 1 : i64, tpu.core_type = #tpu.core_type<tc>, window_params = [{transform_indices = @transform_0, window_bounds = array<i64: 8, 32>}, {transform_indices = @transform_1, window_bounds = array<i64: 8, 1>}, {pipeline_mode = #tpu.pipeline_mode<synchronous>, transform_indices = @transform_2, window_bounds = array<i64: 64, 32>}, {pipeline_mode = #tpu.pipeline_mode<synchronous>, transform_indices = @transform_3, window_bounds = array<i64: 1, 64>}, {pipeline_mode = #tpu.pipeline_mode<synchronous>, transform_indices = @transform_4, window_bounds = array<i64: 32, 64>}, {pipeline_mode = #tpu.pipeline_mode<synchronous>, transform_indices = @transform_5, window_bounds = array<i64: 1, 32>}, {pipeline_mode = #tpu.pipeline_mode<synchronous>, transform_indices = @transform_6, window_bounds = array<i64: 16, 32>}, {pipeline_mode = #tpu.pipeline_mode<synchronous>, transform_indices = @transform_7, window_bounds = array<i64: 1, 16>}, {pipeline_mode = #tpu.pipeline_mode<synchronous>, transform_indices = @transform_8, window_bounds = array<i64: 1, 16>}, {pipeline_mode = #tpu.pipeline_mode<synchronous>, transform_indices = @transform_9, window_bounds = array<i64: 1, 1>}, {pipeline_mode = #tpu.pipeline_mode<synchronous>, transform_indices = @transform_10, window_bounds = array<i64: 1, 2>}, {pipeline_mode = #tpu.pipeline_mode<synchronous>, transform_indices = @transform_11, window_bounds = array<i64: 1, 1>}]} {
    %c0_i32 = arith.constant 0 : i32
    %0 = arith.cmpi eq, %arg0, %c0_i32 : i32
    %1 = arith.extui %0 : i1 to i32
    %c0_i32_0 = arith.constant 0 : i32
    %2 = arith.cmpi ne, %1, %c0_i32_0 : i32
    scf.if %2 {
      %cst_44 = arith.constant 0.000000e+00 : f32
      %90 = vector.broadcast %cst_44 : f32 to vector<1x1xf32>
      %c0_45 = arith.constant 0 : index
      %c0_46 = arith.constant 0 : index
      %91 = vector.load %arg13[%c0_45, %c0_46] : memref<1x1xf32, #tpu.memory_space<vmem>>, vector<1x1xf32>
      tpu.vector_store %arg13[%c0_45, %c0_46], %90 {strides = array<i32>} : memref<1x1xf32, #tpu.memory_space<vmem>>, vector<1x1xf32>,
    } else {
    }
    %c0 = arith.constant 0 : index
    %c0_1 = arith.constant 0 : index
    %3 = vector.load %arg1[%c0, %c0_1] : memref<8x32xbf16, #tpu.memory_space<vmem>>, vector<8x32xbf16>
    %c0_2 = arith.constant 0 : index
    %c0_3 = arith.constant 0 : index
    %4 = vector.load %arg3[%c0_2, %c0_3] : memref<64x32xbf16, #tpu.memory_space<vmem>>, vector<64x32xbf16>
    %cst = arith.constant dense<0.000000e+00> : vector<8x64xf32>
    %5 = tpu.matmul %3, %4, %cst {dimension_numbers = #tpu.dot_dimension_numbers<[1], [1], [0], [0], [0, 0, 1, 0], [], []>} : vector<8x32xbf16>, vector<64x32xbf16>, vector<8x64xf32> -> vector<8x64xf32>
    %c0_4 = arith.constant 0 : index
    %c0_5 = arith.constant 0 : index
    %6 = vector.load %arg4[%c0_4, %c0_5] : memref<1x64xf32, #tpu.memory_space<vmem>>, vector<1x64xf32>
    %7 = vector.broadcast %6 : vector<1x64xf32> to vector<8x64xf32>
    %8 = arith.addf %5, %7 : vector<8x64xf32>
    %cst_6 = arith.constant 0.000000e+00 : f32
    %9 = vector.broadcast %cst_6 : f32 to vector<8x64xf32>
    %10 = arith.cmpf ogt, %8, %9 : vector<8x64xf32>
    %cst_7 = arith.constant 0.00999999977 : f32
    %11 = vector.broadcast %cst_7 : f32 to vector<8x64xf32>
    %12 = arith.mulf %11, %8 : vector<8x64xf32>
    %13 = arith.select %10, %8, %12 : vector<8x64xi1>, vector<8x64xf32>
    %14 = arith.truncf %13 : vector<8x64xf32> to vector<8x64xbf16>
    %c0_8 = arith.constant 0 : index
    %c0_9 = arith.constant 0 : index
    %15 = vector.load %arg5[%c0_8, %c0_9] : memref<32x64xbf16, #tpu.memory_space<vmem>>, vector<32x64xbf16>
    %cst_10 = arith.constant dense<0.000000e+00> : vector<8x32xf32>
    %16 = tpu.matmul %14, %15, %cst_10 {dimension_numbers = #tpu.dot_dimension_numbers<[1], [1], [0], [0], [0, 0, 1, 0], [], []>} : vector<8x64xbf16>, vector<32x64xbf16>, vector<8x32xf32> -> vector<8x32xf32>
    %c0_11 = arith.constant 0 : index
    %c0_12 = arith.constant 0 : index
    %17 = vector.load %arg6[%c0_11, %c0_12] : memref<1x32xf32, #tpu.memory_space<vmem>>, vector<1x32xf32>
    %18 = vector.broadcast %17 : vector<1x32xf32> to vector<8x32xf32>
    %19 = arith.addf %16, %18 : vector<8x32xf32>
    %cst_13 = arith.constant 0.000000e+00 : f32
    %20 = vector.broadcast %cst_13 : f32 to vector<8x32xf32>
    %21 = arith.cmpf ogt, %19, %20 : vector<8x32xf32>
    %cst_14 = arith.constant 0.00999999977 : f32
    %22 = vector.broadcast %cst_14 : f32 to vector<8x32xf32>
    %23 = arith.mulf %22, %19 : vector<8x32xf32>
    %24 = arith.select %21, %19, %23 : vector<8x32xi1>, vector<8x32xf32>
    %25 = arith.truncf %24 : vector<8x32xf32> to vector<8x32xbf16>
    %c0_15 = arith.constant 0 : index
    %c0_16 = arith.constant 0 : index
    %26 = vector.load %arg7[%c0_15, %c0_16] : memref<16x32xbf16, #tpu.memory_space<vmem>>, vector<16x32xbf16>
    %cst_17 = arith.constant dense<0.000000e+00> : vector<8x16xf32>
    %27 = tpu.matmul %25, %26, %cst_17 {dimension_numbers = #tpu.dot_dimension_numbers<[1], [1], [0], [0], [0, 0, 1, 0], [], []>} : vector<8x32xbf16>, vector<16x32xbf16>, vector<8x16xf32> -> vector<8x16xf32>
    %c0_18 = arith.constant 0 : index
    %c0_19 = arith.constant 0 : index
    %28 = vector.load %arg8[%c0_18, %c0_19] : memref<1x16xf32, #tpu.memory_space<vmem>>, vector<1x16xf32>
    %29 = vector.broadcast %28 : vector<1x16xf32> to vector<8x16xf32>
    %30 = arith.addf %27, %29 : vector<8x16xf32>
    %cst_20 = arith.constant 0.000000e+00 : f32
    %31 = vector.broadcast %cst_20 : f32 to vector<8x16xf32>
    %32 = arith.cmpf ogt, %30, %31 : vector<8x16xf32>
    %cst_21 = arith.constant 0.00999999977 : f32
    %33 = vector.broadcast %cst_21 : f32 to vector<8x16xf32>
    %34 = arith.mulf %33, %30 : vector<8x16xf32>
    %35 = arith.select %32, %30, %34 : vector<8x16xi1>, vector<8x16xf32>
    %c0_22 = arith.constant 0 : index
    %c0_23 = arith.constant 0 : index
    %36 = vector.load %arg9[%c0_22, %c0_23] : memref<1x16xf32, #tpu.memory_space<vmem>>, vector<1x16xf32>
    %37 = vector.broadcast %36 : vector<1x16xf32> to vector<8x16xf32>
    %38 = arith.mulf %35, %37 : vector<8x16xf32>
    %cst_24 = arith.constant dense<0.000000e+00> : vector<8xf32>
    %39 = vector.multi_reduction <add>, %38, %cst_24 [1] : vector<8x16xf32> to vector<8xf32>
    %40 = vector.shape_cast %39 : vector<8xf32> to vector<8x1xf32>
    %c0_25 = arith.constant 0 : index
    %c0_26 = arith.constant 0 : index
    %41 = vector.load %arg10[%c0_25, %c0_26] : memref<1x1xf32, #tpu.memory_space<vmem>>, vector<1x1xf32>
    %42 = vector.broadcast %41 : vector<1x1xf32> to vector<8x1xf32>
    %43 = arith.addf %40, %42 : vector<8x1xf32>
    %c0_27 = arith.constant 0 : index
    %c0_28 = arith.constant 0 : index
    %44 = vector.load %arg2[%c0_27, %c0_28] : memref<8x1xf32, #tpu.memory_space<vmem>>, vector<8x1xf32>
    %cst_29 = arith.constant 0.000000e+00 : f32
    %45 = vector.broadcast %cst_29 : f32 to vector<8x1xf32>
    %46 = arith.maximumf %43, %45 : vector<8x1xf32>
    %47 = arith.mulf %43, %44 : vector<8x1xf32>
    %48 = arith.subf %46, %47 : vector<8x1xf32>
    %49 = math.absf %43 : vector<8x1xf32>
    %cst_30 = arith.constant 0.000000e+00 : f32
    %50 = vector.broadcast %cst_30 : f32 to vector<8x1xf32>
    %51 = arith.subf %50, %49 : vector<8x1xf32>
    %52 = math.exp %51 : vector<8x1xf32>
    %cst_31 = arith.constant 9.99999974E-5 : f32
    %53 = vector.broadcast %cst_31 : f32 to vector<8x1xf32>
    %54 = arith.cmpf olt, %52, %53 : vector<8x1xf32>
    %cst_32 = arith.constant 5.000000e-01 : f32
    %55 = vector.broadcast %cst_32 : f32 to vector<8x1xf32>
    %56 = arith.mulf %55, %52 : vector<8x1xf32>
    %cst_33 = arith.constant 1.000000e+00 : f32
    %57 = vector.broadcast %cst_33 : f32 to vector<8x1xf32>
    %58 = arith.subf %57, %56 : vector<8x1xf32>
    %59 = arith.mulf %52, %58 : vector<8x1xf32>
    %cst_34 = arith.constant 1.000000e+00 : f32
    %60 = vector.broadcast %cst_34 : f32 to vector<8x1xf32>
    %61 = arith.addf %60, %52 : vector<8x1xf32>
    %62 = math.log %61 : vector<8x1xf32>
    %63 = arith.select %54, %59, %62 : vector<8x1xi1>, vector<8x1xf32>
    %64 = arith.addf %48, %63 : vector<8x1xf32>
    %c0_35 = arith.constant 0 : index
    %c0_36 = arith.constant 0 : index
    %65 = vector.load %arg11[%c0_35, %c0_36] : memref<1x2xf32, #tpu.memory_space<vmem>>, vector<1x2xf32>
    %66 = vector.broadcast %64 : vector<8x1xf32> to vector<8x2xf32>
    %67 = vector.broadcast %65 : vector<1x2xf32> to vector<8x2xf32>
    %68 = arith.mulf %66, %67 : vector<8x2xf32>
    %c8_i32 = arith.constant 8 : i32
    %69 = arith.muli %arg0, %c8_i32 : i32
    %70 = tpu.iota {dimensions = array<i32: 0>} : vector<8x1xi32>
    %71 = vector.broadcast %69 : i32 to vector<8x1xi32>
    %72 = arith.addi %71, %70 : vector<8x1xi32>
    %c20_i32 = arith.constant 20 : i32
    %73 = vector.broadcast %c20_i32 : i32 to vector<8x1xi32>
    %74 = arith.cmpi slt, %72, %73 : vector<8x1xi32>
    %cst_37 = arith.constant 0.000000e+00 : f32
    %75 = vector.shape_cast %74 : vector<8x1xi1> to vector<8x1xi1>
    %76 = vector.broadcast %75 : vector<8x1xi1> to vector<8x2xi1>
    %77 = vector.broadcast %cst_37 : f32 to vector<8x2xf32>
    %78 = arith.select %76, %68, %77 : vector<8x2xi1>, vector<8x2xf32>
    %c0_38 = arith.constant 0 : index
    %c0_39 = arith.constant 0 : index
    %79 = vector.load %arg13[%c0_38, %c0_39] : memref<1x1xf32, #tpu.memory_space<vmem>>, vector<1x1xf32>
    %80 = vector.shape_cast %78 : vector<8x2xf32> to vector<1x8x2xf32>
    %cst_40 = arith.constant dense<0.000000e+00> : vector<1xf32>
    %81 = vector.multi_reduction <add>, %80, %cst_40 [1, 2] : vector<1x8x2xf32> to vector<1xf32>
    %82 = vector.shape_cast %81 : vector<1xf32> to vector<1x1x1xf32>
    %83 = vector.extract %82[0, 0, 0] : f32 from vector<1x1x1xf32>
    %84 = vector.broadcast %83 : f32 to vector<1x1xf32>
    %85 = arith.addf %79, %84 : vector<1x1xf32>
    %c0_41 = arith.constant 0 : index
    %c0_42 = arith.constant 0 : index
    %86 = vector.load %arg13[%c0_41, %c0_42] : memref<1x1xf32, #tpu.memory_space<vmem>>, vector<1x1xf32>
    tpu.vector_store %arg13[%c0_41, %c0_42], %85 {strides = array<i32>} : memref<1x1xf32, #tpu.memory_space<vmem>>, vector<1x1xf32>,
    %c2_i32 = arith.constant 2 : i32
    %87 = arith.cmpi eq, %arg0, %c2_i32 : i32
    %88 = arith.extui %87 : i1 to i32
    %c0_i32_43 = arith.constant 0 : i32
    %89 = arith.cmpi ne, %88, %c0_i32_43 : i32
    scf.if %89 {
      %c0_44 = arith.constant 0 : index
      %c0_45 = arith.constant 0 : index
      %90 = vector.load %arg13[%c0_44, %c0_45] : memref<1x1xf32, #tpu.memory_space<vmem>>, vector<1x1xf32>
      %cst_46 = arith.constant 2.500000e-02 : f32
      %91 = vector.broadcast %cst_46 : f32 to vector<1x1xf32>
      %92 = arith.mulf %90, %91 : vector<1x1xf32>
      %c0_47 = arith.constant 0 : index
      %c0_48 = arith.constant 0 : index
      %93 = vector.load %arg12[%c0_47, %c0_48] : memref<1x1xf32, #tpu.memory_space<vmem>>, vector<1x1xf32>
      tpu.vector_store %arg12[%c0_47, %c0_48], %92 {strides = array<i32>} : memref<1x1xf32, #tpu.memory_space<vmem>>, vector<1x1xf32>,
    } else {
    }
    return
  }
  func.func @transform_0(%arg0: i32) -> (i32, i32) {
    %c0_i32 = arith.constant 0 : i32
    %c0_i32_0 = arith.constant 0 : i32
    return %arg0, %c0_i32 : i32, i32
  }
  func.func @transform_1(%arg0: i32) -> (i32, i32) {
    %c0_i32 = arith.constant 0 : i32
    %c0_i32_0 = arith.constant 0 : i32
    return %arg0, %c0_i32 : i32, i32
  }
  func.func @transform_2(%arg0: i32) -> (i32, i32) {
    %c0_i32 = arith.constant 0 : i32
    %c0_i32_0 = arith.constant 0 : i32
    %c0_i32_1 = arith.constant 0 : i32
    return %c0_i32, %c0_i32_0 : i32, i32
  }
  func.func @transform_3(%arg0: i32) -> (i32, i32) {
    %c0_i32 = arith.constant 0 : i32
    %c0_i32_0 = arith.constant 0 : i32
    %c0_i32_1 = arith.constant 0 : i32
    return %c0_i32, %c0_i32_0 : i32, i32
  }
  func.func @transform_4(%arg0: i32) -> (i32, i32) {
    %c0_i32 = arith.constant 0 : i32
    %c0_i32_0 = arith.constant 0 : i32
    %c0_i32_1 = arith.constant 0 : i32
    return %c0_i32, %c0_i32_0 : i32, i32
  }
  func.func @transform_5(%arg0: i32) -> (i32, i32) {
    %c0_i32 = arith.constant 0 : i32
    %c0_i32_0 = arith.constant 0 : i32
    %c0_i32_1 = arith.constant 0 : i32
    return %c0_i32, %c0_i32_0 : i32, i32
  }
  func.func @transform_6(%arg0: i32) -> (i32, i32) {
    %c0_i32 = arith.constant 0 : i32
    %c0_i32_0 = arith.constant 0 : i32
    %c0_i32_1 = arith.constant 0 : i32
    return %c0_i32, %c0_i32_0 : i32, i32
  }
  func.func @transform_7(%arg0: i32) -> (i32, i32) {
    %c0_i32 = arith.constant 0 : i32
    %c0_i32_0 = arith.constant 0 : i32
    %c0_i32_1 = arith.constant 0 : i32
    return %c0_i32, %c0_i32_0 : i32, i32
  }
  func.func @transform_8(%arg0: i32) -> (i32, i32) {
    %c0_i32 = arith.constant 0 : i32
    %c0_i32_0 = arith.constant 0 : i32
    %c0_i32_1 = arith.constant 0 : i32
    return %c0_i32, %c0_i32_0 : i32, i32
  }
  func.func @transform_9(%arg0: i32) -> (i32, i32) {
    %c0_i32 = arith.constant 0 : i32
    %c0_i32_0 = arith.constant 0 : i32
    %c0_i32_1 = arith.constant 0 : i32
    return %c0_i32, %c0_i32_0 : i32, i32
  }
  func.func @transform_10(%arg0: i32) -> (i32, i32) {
    %c0_i32 = arith.constant 0 : i32
    %c0_i32_0 = arith.constant 0 : i32
    %c0_i32_1 = arith.constant 0 : i32
    return %c0_i32, %c0_i32_0 : i32, i32
  }
  func.func @transform_11(%arg0: i32) -> (i32, i32) {
    %c0_i32 = arith.constant 0 : i32
    %c0_i32_0 = arith.constant 0 : i32
    %c0_i32_1 = arith.constant 0 : i32
    return %c0_i32, %c0_i32_0 : i32, i32
  }
}

</mosaic_0001>

<llo_original>
// kernel: tpu_custom_call.1
$region0: #{tpu_custom_call.1}
  #allocation0 [shape = 'u32[]', space=smem, size = 0x4, offset = 0x4, fixed_abs, tag = 'smem constant byte address 0x4 - core index']
  #allocation1 [shape = 'u32[144,128]{1,0:T(1,128)}', space=vmem, size = 0x12000, scoped, tag = 'internal scratch']
  #allocation2 [shape = 'f32[1,1]{1,0:T(1,128)}', space=vmem, size = 0x200, scoped, tag = 'scratch operand']
  #allocation3 [shape = 'f32[1,1]{1,0:T(1,128)S(1)}', space=vmem, size = 0x200, scoped, tag = 'scoped memory for tpu_custom_call.1']
  %s0 = inlined_call_operand.vmem [shape: bf16[24,32], index: 0, kind: input, shape index: {}]
  %s1 = inlined_call_operand.vmem [shape: f32[24,1], index: 1, kind: input, shape index: {}]
  %s2 = inlined_call_operand.vmem [shape: bf16[64,32], index: 2, kind: input, shape index: {}]
  %s3 = inlined_call_operand.vmem [shape: f32[1,64], index: 3, kind: input, shape index: {}]
  %s4 = inlined_call_operand.vmem [shape: bf16[32,64], index: 4, kind: input, shape index: {}]
  %s5 = inlined_call_operand.vmem [shape: f32[1,32], index: 5, kind: input, shape index: {}]
  %s6 = inlined_call_operand.vmem [shape: bf16[16,32], index: 6, kind: input, shape index: {}]
  %s7 = inlined_call_operand.vmem [shape: f32[1,16], index: 7, kind: input, shape index: {}]
  %s8 = inlined_call_operand.vmem [shape: f32[1,16], index: 8, kind: input, shape index: {}]
  %s9 = inlined_call_operand.<no memory space> [shape: f32[1,1], index: 9, kind: input, shape index: {}]
  %s10 = inlined_call_operand.vmem [shape: f32[1,2], index: 10, kind: input, shape index: {}]
  %s11 = inlined_call_operand.hbm [shape: f32[1,1], index: 11, kind: output, shape index: {}]
  %s12 = sld [smem:[#allocation0]]
  $region85: #{tpu_custom_call.1} parent=0
    _
  %s14 = ssub.s32 1, %s12
  %s15 = scalar_select 0, %s14, %s12
  %v16 = vstv %s9
  %17 = vst [vmem:[#allocation3] sm:$0x1] %v16
  $region1: #{tpu_custom_call.1} parent=0
    #allocation4 [shape = 'u8[512]{0}', space=vmem, size = 0x400, scoped, tag = 'output window, operand 0, single buffered']
    #allocation5 [shape = 's32[2]{0}', space=sflag, size = 0x8, scoped, tag = 'scoped memory for tpu_custom_call.1']
    %18 = vsyncpa [#allocation5], 0
    loop: start=0, step=1, limit=5
    $region2: #{tpu_custom_call.1} parent=1 // loop_pre_header
      _
    $region3: #{tpu_custom_call.1} parent=1 // loop_header
      %s20 = sphi 0, %s24
      %p21 = scmp.ge.s32.totalorder %s20, 5
      %s30 = sphi 0, %s32
      %s33 = sphi 0, %s30
      %s34 = sphi 0, %s33
      %s50 = sphi 0, %s34
      %s56 = sphi 0, %s58
      %s59 = sphi 0, %s56
      %s60 = sphi 0, %s59
      %s76 = sphi 0, %s60
      %s80 = sphi 0, %s80
      %s82 = sphi 0, %s80
      %s83 = sphi 0, %s82
      %s97 = sphi 0, %s83
      %s101 = sphi 0, %s101
      %s103 = sphi 0, %s101
      %s104 = sphi 0, %s103
      %s118 = sphi 0, %s104
      %s122 = sphi 0, %s122
      %s124 = sphi 0, %s122
      %s125 = sphi 0, %s124
      %s139 = sphi 0, %s125
      %s143 = sphi 0, %s143
      %s145 = sphi 0, %s143
      %s146 = sphi 0, %s145
      %s160 = sphi 0, %s146
      %s164 = sphi 0, %s164
      %s166 = sphi 0, %s164
      %s167 = sphi 0, %s166
      %s181 = sphi 0, %s167
      %s185 = sphi 0, %s185
      %s187 = sphi 0, %s185
      %s188 = sphi 0, %s187
      %s202 = sphi 0, %s188
      %s206 = sphi 0, %s206
      %s208 = sphi 0, %s206
      %s209 = sphi 0, %s208
      %s223 = sphi 0, %s209
      %s227 = sphi 0, %s227
      %s229 = sphi 0, %s227
      %s230 = sphi 0, %s229
      %s244 = sphi 0, %s230
      %s248 = sphi 0, %s248
      %s250 = sphi 0, %s248
      %s251 = sphi 0, %s250
      %s265 = sphi 0, %s251
      %s269 = sphi 0, %s269
      %s271 = sphi 0, %s269
      %s272 = sphi 0, %s271
      %s286 = sphi 0, %s272
    $region4: #{tpu_custom_call.1} parent=1 // loop_header_branch
      %23 = sbr.rel (%p21) target = $region8
    $region5: #{tpu_custom_call.1} parent=1 // loop_body
      %s25 = ssub.s32 %s20, 1
      %s26 = ssub.s32 %s20, 2
      %s27 = sadd.s32 %s20, 1
      %s28 = ssub.s32 %s20, %s27
      %p29 = scmp.eq.s32.totalorder %s28, 0
      %s31 = sadd.s32 %s30, 1
      %s32 = scalar_select %p29, %s30, %s31
      %p35 = pneg %p29
      %p36 = scmp.eq.s32.totalorder %s20, 2
      %p37 = por %p35, %p36
      %p38 = scmp.ne.s32.totalorder %s30, %s33
      %p39 = scmp.eq.s32.totalorder %s20, 0
      %p40 = por %p38, %p39
      %p41 = scmp.ne.s32.totalorder %s30, %s33
      %p42 = scmp.eq.s32.totalorder %s25, 2
      %p43 = por %p41, %p42
      %p44 = scmp.ne.s32.totalorder %s33, %s34
      %p45 = scmp.eq.s32.totalorder %s25, 0
      %p46 = por %p44, %p45
      %p47 = scmp.ne.s32.totalorder %s33, %s34
      %p48 = scmp.eq.s32.totalorder %s26, 2
      %p49 = por %p47, %p48
      %p51 = scmp.ne.s32.totalorder %s34, %s50
      %p52 = scmp.eq.s32.totalorder %s26, 0
      %p53 = por %p51, %p52
      %s54 = ssub.s32 %s20, %s27
      %p55 = scmp.eq.s32.totalorder %s54, 0
      %s57 = sadd.s32 %s56, 1
      %s58 = scalar_select %p55, %s56, %s57
      %p61 = pneg %p55
      %p62 = scmp.eq.s32.totalorder %s20, 2
      %p63 = por %p61, %p62
      %p64 = scmp.ne.s32.totalorder %s56, %s59
      %p65 = scmp.eq.s32.totalorder %s20, 0
      %p66 = por %p64, %p65
      %p67 = scmp.ne.s32.totalorder %s56, %s59
      %p68 = scmp.eq.s32.totalorder %s25, 2
      %p69 = por %p67, %p68
      %p70 = scmp.ne.s32.totalorder %s59, %s60
      %p71 = scmp.eq.s32.totalorder %s25, 0
      %p72 = por %p70, %p71
      %p73 = scmp.ne.s32.totalorder %s59, %s60
      %p74 = scmp.eq.s32.totalorder %s26, 2
      %p75 = por %p73, %p74
      %p77 = scmp.ne.s32.totalorder %s60, %s76
      %p78 = scmp.eq.s32.totalorder %s26, 0
      %p79 = por %p77, %p78
      %s81 = sadd.s32 %s80, 1
      %p84 = scmp.eq.s32.totalorder %s20, 2
      %p85 = scmp.ne.s32.totalorder %s80, %s82
      %p86 = scmp.eq.s32.totalorder %s20, 0
      %p87 = por %p85, %p86
      %p88 = scmp.ne.s32.totalorder %s80, %s82
      %p89 = scmp.eq.s32.totalorder %s25, 2
      %p90 = por %p88, %p89
      %p91 = scmp.ne.s32.totalorder %s82, %s83
      %p92 = scmp.eq.s32.totalorder %s25, 0
      %p93 = por %p91, %p92
      %p94 = scmp.ne.s32.totalorder %s82, %s83
      %p95 = scmp.eq.s32.totalorder %s26, 2
      %p96 = por %p94, %p95
      %p98 = scmp.ne.s32.totalorder %s83, %s97
      %p99 = scmp.eq.s32.totalorder %s26, 0
      %p100 = por %p98, %p99
      %s102 = sadd.s32 %s101, 1
      %p105 = scmp.eq.s32.totalorder %s20, 2
      %p106 = scmp.ne.s32.totalorder %s101, %s103
      %p107 = scmp.eq.s32.totalorder %s20, 0
      %p108 = por %p106, %p107
      %p109 = scmp.ne.s32.totalorder %s101, %s103
      %p110 = scmp.eq.s32.totalorder %s25, 2
      %p111 = por %p109, %p110
      %p112 = scmp.ne.s32.totalorder %s103, %s104
      %p113 = scmp.eq.s32.totalorder %s25, 0
      %p114 = por %p112, %p113
      %p115 = scmp.ne.s32.totalorder %s103, %s104
      %p116 = scmp.eq.s32.totalorder %s26, 2
      %p117 = por %p115, %p116
      %p119 = scmp.ne.s32.totalorder %s104, %s118
      %p120 = scmp.eq.s32.totalorder %s26, 0
      %p121 = por %p119, %p120
      %s123 = sadd.s32 %s122, 1
      %p126 = scmp.eq.s32.totalorder %s20, 2
      %p127 = scmp.ne.s32.totalorder %s122, %s124
      %p128 = scmp.eq.s32.totalorder %s20, 0
      %p129 = por %p127, %p128
      %p130 = scmp.ne.s32.totalorder %s122, %s124
      %p131 = scmp.eq.s32.totalorder %s25, 2
      %p132 = por %p130, %p131
      %p133 = scmp.ne.s32.totalorder %s124, %s125
      %p134 = scmp.eq.s32.totalorder %s25, 0
      %p135 = por %p133, %p134
      %p136 = scmp.ne.s32.totalorder %s124, %s125
      %p137 = scmp.eq.s32.totalorder %s26, 2
      %p138 = por %p136, %p137
      %p140 = scmp.ne.s32.totalorder %s125, %s139
      %p141 = scmp.eq.s32.totalorder %s26, 0
      %p142 = por %p140, %p141
      %s144 = sadd.s32 %s143, 1
      %p147 = scmp.eq.s32.totalorder %s20, 2
      %p148 = scmp.ne.s32.totalorder %s143, %s145
      %p149 = scmp.eq.s32.totalorder %s20, 0
      %p150 = por %p148, %p149
      %p151 = scmp.ne.s32.totalorder %s143, %s145
      %p152 = scmp.eq.s32.totalorder %s25, 2
      %p153 = por %p151, %p152
      %p154 = scmp.ne.s32.totalorder %s145, %s146
      %p155 = scmp.eq.s32.totalorder %s25, 0
      %p156 = por %p154, %p155
      %p157 = scmp.ne.s32.totalorder %s145, %s146
      %p158 = scmp.eq.s32.totalorder %s26, 2
      %p159 = por %p157, %p158
      %p161 = scmp.ne.s32.totalorder %s146, %s160
      %p162 = scmp.eq.s32.totalorder %s26, 0
      %p163 = por %p161, %p162
      %s165 = sadd.s32 %s164, 1
      %p168 = scmp.eq.s32.totalorder %s20, 2
      %p169 = scmp.ne.s32.totalorder %s164, %s166
      %p170 = scmp.eq.s32.totalorder %s20, 0
      %p171 = por %p169, %p170
      %p172 = scmp.ne.s32.totalorder %s164, %s166
      %p173 = scmp.eq.s32.totalorder %s25, 2
      %p174 = por %p172, %p173
      %p175 = scmp.ne.s32.totalorder %s166, %s167
      %p176 = scmp.eq.s32.totalorder %s25, 0
      %p177 = por %p175, %p176
      %p178 = scmp.ne.s32.totalorder %s166, %s167
      %p179 = scmp.eq.s32.totalorder %s26, 2
      %p180 = por %p178, %p179
      %p182 = scmp.ne.s32.totalorder %s167, %s181
      %p183 = scmp.eq.s32.totalorder %s26, 0
      %p184 = por %p182, %p183
      %s186 = sadd.s32 %s185, 1
      %p189 = scmp.eq.s32.totalorder %s20, 2
      %p190 = scmp.ne.s32.totalorder %s185, %s187
      %p191 = scmp.eq.s32.totalorder %s20, 0
      %p192 = por %p190, %p191
      %p193 = scmp.ne.s32.totalorder %s185, %s187
      %p194 = scmp.eq.s32.totalorder %s25, 2
      %p195 = por %p193, %p194
      %p196 = scmp.ne.s32.totalorder %s187, %s188
      %p197 = scmp.eq.s32.totalorder %s25, 0
      %p198 = por %p196, %p197
      %p199 = scmp.ne.s32.totalorder %s187, %s188
      %p200 = scmp.eq.s32.totalorder %s26, 2
      %p201 = por %p199, %p200
      %p203 = scmp.ne.s32.totalorder %s188, %s202
      %p204 = scmp.eq.s32.totalorder %s26, 0
      %p205 = por %p203, %p204
      %s207 = sadd.s32 %s206, 1
      %p210 = scmp.eq.s32.totalorder %s20, 2
      %p211 = scmp.ne.s32.totalorder %s206, %s208
      %p212 = scmp.eq.s32.totalorder %s20, 0
      %p213 = por %p211, %p212
      %p214 = scmp.ne.s32.totalorder %s206, %s208
      %p215 = scmp.eq.s32.totalorder %s25, 2
      %p216 = por %p214, %p215
      %p217 = scmp.ne.s32.totalorder %s208, %s209
      %p218 = scmp.eq.s32.totalorder %s25, 0
      %p219 = por %p217, %p218
      %p220 = scmp.ne.s32.totalorder %s208, %s209
      %p221 = scmp.eq.s32.totalorder %s26, 2
      %p222 = por %p220, %p221
      %p224 = scmp.ne.s32.totalorder %s209, %s223
      %p225 = scmp.eq.s32.totalorder %s26, 0
      %p226 = por %p224, %p225
      %s228 = sadd.s32 %s227, 1
      %p231 = scmp.eq.s32.totalorder %s20, 2
      %p232 = scmp.ne.s32.totalorder %s227, %s229
      %p233 = scmp.eq.s32.totalorder %s20, 0
      %p234 = por %p232, %p233
      %p235 = scmp.ne.s32.totalorder %s227, %s229
      %p236 = scmp.eq.s32.totalorder %s25, 2
      %p237 = por %p235, %p236
      %p238 = scmp.ne.s32.totalorder %s229, %s230
      %p239 = scmp.eq.s32.totalorder %s25, 0
      %p240 = por %p238, %p239
      %p241 = scmp.ne.s32.totalorder %s229, %s230
      %p242 = scmp.eq.s32.totalorder %s26, 2
      %p243 = por %p241, %p242
      %p245 = scmp.ne.s32.totalorder %s230, %s244
      %p246 = scmp.eq.s32.totalorder %s26, 0
      %p247 = por %p245, %p246
      %s249 = sadd.s32 %s248, 1
      %p252 = scmp.eq.s32.totalorder %s20, 2
      %p253 = scmp.ne.s32.totalorder %s248, %s250
      %p254 = scmp.eq.s32.totalorder %s20, 0
      %p255 = por %p253, %p254
      %p256 = scmp.ne.s32.totalorder %s248, %s250
      %p257 = scmp.eq.s32.totalorder %s25, 2
      %p258 = por %p256, %p257
      %p259 = scmp.ne.s32.totalorder %s250, %s251
      %p260 = scmp.eq.s32.totalorder %s25, 0
      %p261 = por %p259, %p260
      %p262 = scmp.ne.s32.totalorder %s250, %s251
      %p263 = scmp.eq.s32.totalorder %s26, 2
      %p264 = por %p262, %p263
      %p266 = scmp.ne.s32.totalorder %s251, %s265
      %p267 = scmp.eq.s32.totalorder %s26, 0
      %p268 = por %p266, %p267
      %s270 = sadd.s32 %s269, 1
      %p273 = scmp.eq.s32.totalorder %s20, 2
      %p274 = scmp.ne.s32.totalorder %s269, %s271
      %p275 = scmp.eq.s32.totalorder %s20, 0
      %p276 = por %p274, %p275
      %p277 = scmp.ne.s32.totalorder %s269, %s271
      %p278 = scmp.eq.s32.totalorder %s25, 2
      %p279 = por %p277, %p278
      %p280 = scmp.ne.s32.totalorder %s271, %s272
      %p281 = scmp.eq.s32.totalorder %s25, 0
      %p282 = por %p280, %p281
      %p283 = scmp.ne.s32.totalorder %s271, %s272
      %p284 = scmp.eq.s32.totalorder %s26, 2
      %p285 = por %p283, %p284
      %p287 = scmp.ne.s32.totalorder %s272, %s286
      %p288 = scmp.eq.s32.totalorder %s26, 0
      %p289 = por %p287, %p288
      %p290 = scmp.le.s32.totalorder 1, %s20
      %p291 = scmp.lt.s32.totalorder %s20, 4
      %p292 = pnand %p290, %p291
      %p293 = pneg %p292
      // Predicated region
      $region9: #{tpu_custom_call.1} parent=5 // pred_check
        _
      $region10: #{tpu_custom_call.1} parent=5 // pred_check_branch
        %295 = sbr.rel (%p292) target = $region12
      $region11: #{tpu_custom_call.1} parent=5 // pred_region
        %s296 = ssub.s32 %s20, 1
        // Predicated region
        $region13: #{tpu_custom_call.1} parent=11 // pred_check
          %p297 = pneg %p93
        $region14: #{tpu_custom_call.1} parent=11 // pred_check_branch
          %299 = sbr.rel (%p297) target = $region16
        $region15: #{tpu_custom_call.1} parent=11 // pred_region
          _
        $region16: #{tpu_custom_call.1} parent=11 // pred_fallthru
          _
        // Predicated region
        $region17: #{tpu_custom_call.1} parent=11 // pred_check
          %p300 = pneg %p114
        $region18: #{tpu_custom_call.1} parent=11 // pred_check_branch
          %302 = sbr.rel (%p300) target = $region20
        $region19: #{tpu_custom_call.1} parent=11 // pred_region
          _
        $region20: #{tpu_custom_call.1} parent=11 // pred_fallthru
          _
        // Predicated region
        $region21: #{tpu_custom_call.1} parent=11 // pred_check
          %p303 = pneg %p135
        $region22: #{tpu_custom_call.1} parent=11 // pred_check_branch
          %305 = sbr.rel (%p303) target = $region24
        $region23: #{tpu_custom_call.1} parent=11 // pred_region
          _
        $region24: #{tpu_custom_call.1} parent=11 // pred_fallthru
          _
        // Predicated region
        $region25: #{tpu_custom_call.1} parent=11 // pred_check
          %p306 = pneg %p156
        $region26: #{tpu_custom_call.1} parent=11 // pred_check_branch
          %308 = sbr.rel (%p306) target = $region28
        $region27: #{tpu_custom_call.1} parent=11 // pred_region
          _
        $region28: #{tpu_custom_call.1} parent=11 // pred_fallthru
          _
        // Predicated region
        $region29: #{tpu_custom_call.1} parent=11 // pred_check
          %p309 = pneg %p177
        $region30: #{tpu_custom_call.1} parent=11 // pred_check_branch
          %311 = sbr.rel (%p309) target = $region32
        $region31: #{tpu_custom_call.1} parent=11 // pred_region
          _
        $region32: #{tpu_custom_call.1} parent=11 // pred_fallthru
          _
        // Predicated region
        $region33: #{tpu_custom_call.1} parent=11 // pred_check
          %p312 = pneg %p198
        $region34: #{tpu_custom_call.1} parent=11 // pred_check_branch
          %314 = sbr.rel (%p312) target = $region36
        $region35: #{tpu_custom_call.1} parent=11 // pred_region
          _
        $region36: #{tpu_custom_call.1} parent=11 // pred_fallthru
          _
        // Predicated region
        $region37: #{tpu_custom_call.1} parent=11 // pred_check
          %p315 = pneg %p219
        $region38: #{tpu_custom_call.1} parent=11 // pred_check_branch
          %317 = sbr.rel (%p315) target = $region40
        $region39: #{tpu_custom_call.1} parent=11 // pred_region
          _
        $region40: #{tpu_custom_call.1} parent=11 // pred_fallthru
          _
        // Predicated region
        $region41: #{tpu_custom_call.1} parent=11 // pred_check
          %p318 = pneg %p240
        $region42: #{tpu_custom_call.1} parent=11 // pred_check_branch
          %320 = sbr.rel (%p318) target = $region44
        $region43: #{tpu_custom_call.1} parent=11 // pred_region
          _
        $region44: #{tpu_custom_call.1} parent=11 // pred_fallthru
          _
        // Predicated region
        $region45: #{tpu_custom_call.1} parent=11 // pred_check
          %p321 = pneg %p261
        $region46: #{tpu_custom_call.1} parent=11 // pred_check_branch
          %323 = sbr.rel (%p321) target = $region48
        $region47: #{tpu_custom_call.1} parent=11 // pred_region
          _
        $region48: #{tpu_custom_call.1} parent=11 // pred_fallthru
          _
      $region12: #{tpu_custom_call.1} parent=5 // pred_fallthru
        _
      %p324 = scmp.lt.s32.totalorder %s20, 3
      // Predicated region
      $region49: #{tpu_custom_call.1} parent=5 // pred_check
        %p325 = pneg %p324
      $region50: #{tpu_custom_call.1} parent=5 // pred_check_branch
        %327 = sbr.rel (%p325) target = $region52
      $region51: #{tpu_custom_call.1} parent=5 // pred_region
        // Predicated region
        $region53: #{tpu_custom_call.1} parent=51 // pred_check
          %p328 = pneg %p40
        $region54: #{tpu_custom_call.1} parent=51 // pred_check_branch
          %330 = sbr.rel (%p328) target = $region56
        $region55: #{tpu_custom_call.1} parent=51 // pred_region
          %p331 = scmp.lt.s32.totalorder %s20, 2
          %s332 = scalar_select %p331, %s20, 2
          %s333 = smul.addr %s332, 4
          %s334 = scalar_lea.vmem %s0, %s333
        $region56: #{tpu_custom_call.1} parent=51 // pred_fallthru
          _
        // Predicated region
        $region57: #{tpu_custom_call.1} parent=51 // pred_check
          %p335 = pneg %p66
        $region58: #{tpu_custom_call.1} parent=51 // pred_check_branch
          %337 = sbr.rel (%p335) target = $region60
        $region59: #{tpu_custom_call.1} parent=51 // pred_region
          %p338 = scmp.lt.s32.totalorder %s20, 2
          %s339 = scalar_select %p338, %s20, 2
          %s340 = smul.addr %s339, 8
          %s341 = scalar_lea.vmem %s1, %s340
        $region60: #{tpu_custom_call.1} parent=51 // pred_fallthru
          _
      $region52: #{tpu_custom_call.1} parent=5 // pred_fallthru
        _
      %p342 = scmp.le.s32.totalorder 1, %s20
      %p343 = scmp.lt.s32.totalorder %s20, 4
      %p344 = pnand %p342, %p343
      %p345 = pneg %p344
      // Predicated region
      $region61: #{tpu_custom_call.1} parent=5 // pred_check
        _
      $region62: #{tpu_custom_call.1} parent=5 // pred_check_branch
        %347 = sbr.rel (%p344) target = $region64
      $region63: #{tpu_custom_call.1} parent=5 // pred_region
        %s348 = ssub.s32 %s20, 1
        %p349 = scmp.lt.s32.totalorder %s25, 2
        %s350 = scalar_select %p349, %s25, 2
        %s351 = smul.addr %s350, 4
        %s352 = scalar_lea.vmem %s0, %s351
        %p353 = pneg %p46
        %p354 = pneg %p43
        %p355 = scmp.lt.s32.totalorder %s25, 2
        %s356 = scalar_select %p355, %s25, 2
        %s357 = smul.addr %s356, 8
        %s358 = scalar_lea.vmem %s1, %s357
        %p359 = pneg %p72
        %p360 = pneg %p69
        %p361 = pneg %p93
        %p362 = pneg %p90
        %p363 = pneg %p114
        %p364 = pneg %p111
        %p365 = pneg %p135
        %p366 = pneg %p132
        %p367 = pneg %p156
        %p368 = pneg %p153
        %p369 = pneg %p177
        %p370 = pneg %p174
        %p371 = pneg %p198
        %p372 = pneg %p195
        %p373 = pneg %p219
        %p374 = pneg %p216
        %p375 = pneg %p240
        %p376 = pneg %p237
        %p377 = pneg %p261
        %p378 = pneg %p258
        %p379 = pneg %p282
        %p380 = pneg %p279
        %p381 = scmp.lt.s32.totalorder %s25, 2
        %s382 = scalar_select %p381, %s25, 2
        %s383 = smul.addr %s382, 4
        %s384 = scalar_lea.vmem %s0, %s383
        %p385 = scmp.lt.s32.totalorder %s25, 2
        %s386 = scalar_select %p385, %s25, 2
        %s387 = smul.addr %s386, 8
        %s388 = scalar_lea.vmem %s1, %s387
        %p390 = scmp.eq.s32.totalorder %s25, 0
        // Predicated region
        $region65: #{tpu_custom_call.1} parent=63 // pred_check
          %p391 = pneg %p390
        $region66: #{tpu_custom_call.1} parent=63 // pred_check_branch
          %393 = sbr.rel (%p391) target = $region68
        $region67: #{tpu_custom_call.1} parent=63 // pred_region
          %vm394 = vcmask 0
          %395 = vst.msk [vmem:[#allocation2] sm:$0x1] %vm394, 0.0
        $region68: #{tpu_custom_call.1} parent=63 // pred_fallthru
          _
        %v396 = vld [vmem:[%s384] sm:$0xf]
        %v397 = vld [vmem:[%s2] sm:$0xf]
        %v398 = vld [vmem:[%s2 + $0x4] sm:$0xf]
        %v399 = vld [vmem:[%s2 + $0x8] sm:$0xf]
        %v400 = vld [vmem:[%s2 + $0xc] sm:$0xf]
        %v401 = vld [vmem:[%s2 + $0x10] sm:$0xf]
        %v402 = vld [vmem:[%s2 + $0x14] sm:$0xf]
        %v403 = vld [vmem:[%s2 + $0x18] sm:$0xf]
        %v404 = vld [vmem:[%s2 + $0x1c] sm:$0xf]
        %v405 = vld [vmem:[%s3] sm:$0x1]
        %v407 = vlaneseq
        %v408 = vshrl.u32 %v407, 7
        %v409 = vsub.s32 0, %v408
        %v410 = vrot.slane %v405, %v409
        %v420 = vunpack.c.l.b16 %v397
        %v421 = vunpack.c.l.b16 %v398
        %v422 = vunpack.c.l.b16 %v399
        %v423 = vunpack.c.l.b16 %v400
        %v424 = vunpack.c.l.b16 %v401
        %v425 = vunpack.c.l.b16 %v402
        %v426 = vunpack.c.l.b16 %v403
        %v427 = vunpack.c.l.b16 %v404
        %v428 = vpack.c.b16 %v421, %v420
        %v429 = vpack.c.b16 %v423, %v422
        %v430 = vpack.c.b16 %v425, %v424
        %v431 = vpack.c.b16 %v427, %v426
        %vm432 = vcmask 261120
        %v434 = vsel %vm432, %v396, 0
        %v437 = vsel %vm432, %v428, 0
        %v440 = vsel %vm432, %v429, 0
        %v443 = vsel %vm432, %v430, 0
        %v446 = vsel %vm432, %v431, 0
        %448 = vmatprep.subr.bf16.mxu0 0
        %449 = vmatpush1.bf16.xpose.msra.mxu0 0
        %450 = vmatprep.subr.bf16.mxu0 0
        %451 = vmatpush1.bf16.xpose.msra.mxu0 0
        %452 = vmatprep.subr.bf16.mxu0 0
        %453 = vmatpush1.bf16.xpose.msra.mxu0 0
        %454 = vmatprep.subr.bf16.mxu0 0
        %455 = vmatpush1.bf16.xpose.msra.mxu0 0
        %456 = vmatprep.subr.bf16.mxu0 0
        %457 = vmatpush1.bf16.xpose.msra.mxu0 %v446
        %458 = vmatprep.subr.bf16.mxu0 0
        %459 = vmatpush1.bf16.xpose.msra.mxu0 %v443
        %460 = vmatprep.subr.bf16.mxu0 0
        %461 = vmatpush1.bf16.xpose.msra.mxu0 %v440
        %462 = vmatprep.subr.bf16.mxu0 0
        %463 = vmatpush1.bf16.xpose.msra.mxu0 %v437
        %464 = vmatprep.subr.bf16.mxu0 0
        %465 = vmatpush2.bf16.xpose.msra.mxu0 0
        %466 = vmatprep.subr.bf16.mxu0 0
        %467 = vmatpush2.bf16.xpose.msra.mxu0 0
        %468 = vmatprep.subr.bf16.mxu0 0
        %469 = vmatpush2.bf16.xpose.msra.mxu0 0
        %470 = vmatprep.subr.bf16.mxu0 0
        %471 = vmatpush2.bf16.xpose.msra.mxu0 0
        %472 = vmatprep.subr.bf16.mxu0 0
        %473 = vmatpush2.bf16.xpose.msra.mxu0 0
        %474 = vmatprep.subr.bf16.mxu0 0
        %475 = vmatpush2.bf16.xpose.msra.mxu0 0
        %476 = vmatprep.subr.bf16.mxu0 0
        %477 = vmatpush2.bf16.xpose.msra.mxu0 0
        %478 = vmatprep.subr.bf16.mxu0 0
        %479 = vmatpush2.bf16.xpose.msra.mxu0 0
        %480 = vmatprep.mubr.bf16.mxu0 0
        %481 = vmatmul.mubr.bf16.gmra.mxu0 %v434
        %v482 = vpop.f32.mrf.mxu0
        %v483 = vadd.f32 %v410, %v482
        %v484 = vpop.f32.mrf.mxu0
        %v485 = vpop.f32.mrf.mxu0
        %v486 = vpop.f32.mrf.mxu0
        %487 = vdwg.mxu0
        %vm488 = vcmp.gt.f32.partialorder %v483, 0.0
        %v489 = vmul.f32 %v483, 0.01
        %v490 = vsel %vm488, %v483, %v489
        %v491 = vpack.c.bf16 %v490, %v490
        %v492 = vld [vmem:[%s4] sm:$0xf]
        %v493 = vld [vmem:[%s4 + $0x4] sm:$0xf]
        %v494 = vld [vmem:[%s4 + $0x8] sm:$0xf]
        %v495 = vld [vmem:[%s4 + $0xc] sm:$0xf]
        %v496 = vld [vmem:[%s5] sm:$0x1]
        %v498 = vlaneseq
        %v499 = vshrl.u32 %v498, 7
        %v500 = vsub.s32 0, %v499
        %v501 = vrot.slane %v496, %v500
        %v507 = vunpack.c.l.b16 %v492
        %v508 = vunpack.c.l.b16 %v493
        %v509 = vunpack.c.l.b16 %v494
        %v510 = vunpack.c.l.b16 %v495
        %v511 = vpack.c.b16 %v508, %v507
        %v512 = vpack.c.b16 %v510, %v509
        %vm513 = vcmask 523264
        %v515 = vsel %vm513, %v491, 0
        %v518 = vsel %vm513, %v511, 0
        %v521 = vsel %vm513, %v512, 0
        %523 = vmatprep.subr.bf16.mxu0 0
        %524 = vmatpush1.bf16.xpose.msra.mxu0 0
        %525 = vmatprep.subr.bf16.mxu0 0
        %526 = vmatpush1.bf16.xpose.msra.mxu0 0
        %527 = vmatprep.subr.bf16.mxu0 0
        %528 = vmatpush1.bf16.xpose.msra.mxu0 0
        %529 = vmatprep.subr.bf16.mxu0 0
        %530 = vmatpush1.bf16.xpose.msra.mxu0 0
        %531 = vmatprep.subr.bf16.mxu0 0
        %532 = vmatpush1.bf16.xpose.msra.mxu0 0
        %533 = vmatprep.subr.bf16.mxu0 0
        %534 = vmatpush1.bf16.xpose.msra.mxu0 0
        %535 = vmatprep.subr.bf16.mxu0 0
        %536 = vmatpush1.bf16.xpose.msra.mxu0 %v521
        %537 = vmatprep.subr.bf16.mxu0 0
        %538 = vmatpush1.bf16.xpose.msra.mxu0 %v518
        %539 = vmatprep.subr.bf16.mxu0 0
        %540 = vmatpush2.bf16.xpose.msra.mxu0 0
        %541 = vmatprep.subr.bf16.mxu0 0
        %542 = vmatpush2.bf16.xpose.msra.mxu0 0
        %543 = vmatprep.subr.bf16.mxu0 0
        %544 = vmatpush2.bf16.xpose.msra.mxu0 0
        %545 = vmatprep.subr.bf16.mxu0 0
        %546 = vmatpush2.bf16.xpose.msra.mxu0 0
        %547 = vmatprep.subr.bf16.mxu0 0
        %548 = vmatpush2.bf16.xpose.msra.mxu0 0
        %549 = vmatprep.subr.bf16.mxu0 0
        %550 = vmatpush2.bf16.xpose.msra.mxu0 0
        %551 = vmatprep.subr.bf16.mxu0 0
        %552 = vmatpush2.bf16.xpose.msra.mxu0 0
        %553 = vmatprep.subr.bf16.mxu0 0
        %554 = vmatpush2.bf16.xpose.msra.mxu0 0
        %555 = vmatprep.mubr.bf16.mxu0 0
        %556 = vmatmul.mubr.bf16.gmra.mxu0 %v515
        %v557 = vpop.f32.mrf.mxu0
        %v558 = vadd.f32 %v501, %v557
        %v559 = vpop.f32.mrf.mxu0
        %v560 = vpop.f32.mrf.mxu0
        %v561 = vpop.f32.mrf.mxu0
        %562 = vdwg.mxu0
        %vm563 = vcmp.gt.f32.partialorder %v558, 0.0
        %v564 = vmul.f32 %v558, 0.01
        %v565 = vsel %vm563, %v558, %v564
        %v566 = vpack.c.bf16 %v565, %v565
        %v567 = vld [vmem:[%s6] sm:$0xf]
        %v568 = vld [vmem:[%s6 + $0x4] sm:$0xf]
        %v569 = vld [vmem:[%s7] sm:$0x1]
        %v571 = vlaneseq
        %v572 = vshrl.u32 %v571, 7
        %v573 = vsub.s32 0, %v572
        %v574 = vrot.slane %v569, %v573
        %v578 = vunpack.c.l.b16 %v567
        %v579 = vunpack.c.l.b16 %v568
        %v580 = vpack.c.b16 %v579, %v578
        %v582 = vsel %vm432, %v566, 0
        %v585 = vsel %vm432, %v580, 0
        %587 = vmatprep.subr.bf16.mxu0 0
        %588 = vmatpush1.bf16.xpose.msra.mxu0 0
        %589 = vmatprep.subr.bf16.mxu0 0
        %590 = vmatpush1.bf16.xpose.msra.mxu0 0
        %591 = vmatprep.subr.bf16.mxu0 0
        %592 = vmatpush1.bf16.xpose.msra.mxu0 0
        %593 = vmatprep.subr.bf16.mxu0 0
        %594 = vmatpush1.bf16.xpose.msra.mxu0 0
        %595 = vmatprep.subr.bf16.mxu0 0
        %596 = vmatpush1.bf16.xpose.msra.mxu0 0
        %597 = vmatprep.subr.bf16.mxu0 0
        %598 = vmatpush1.bf16.xpose.msra.mxu0 0
        %599 = vmatprep.subr.bf16.mxu0 0
        %600 = vmatpush1.bf16.xpose.msra.mxu0 0
        %601 = vmatprep.subr.bf16.mxu0 0
        %602 = vmatpush1.bf16.xpose.msra.mxu0 %v585
        %603 = vmatprep.subr.bf16.mxu0 0
        %604 = vmatpush2.bf16.xpose.msra.mxu0 0
        %605 = vmatprep.subr.bf16.mxu0 0
        %606 = vmatpush2.bf16.xpose.msra.mxu0 0
        %607 = vmatprep.subr.bf16.mxu0 0
        %608 = vmatpush2.bf16.xpose.msra.mxu0 0
        %609 = vmatprep.subr.bf16.mxu0 0
        %610 = vmatpush2.bf16.xpose.msra.mxu0 0
        %611 = vmatprep.subr.bf16.mxu0 0
        %612 = vmatpush2.bf16.xpose.msra.mxu0 0
        %613 = vmatprep.subr.bf16.mxu0 0
        %614 = vmatpush2.bf16.xpose.msra.mxu0 0
        %615 = vmatprep.subr.bf16.mxu0 0
        %616 = vmatpush2.bf16.xpose.msra.mxu0 0
        %617 = vmatprep.subr.bf16.mxu0 0
        %618 = vmatpush2.bf16.xpose.msra.mxu0 0
        %619 = vmatprep.mubr.bf16.mxu0 0
        %620 = vmatmul.mubr.bf16.gmra.mxu0 %v582
        %v621 = vpop.f32.mrf.mxu0
        %v622 = vadd.f32 %v574, %v621
        %v623 = vpop.f32.mrf.mxu0
        %v624 = vpop.f32.mrf.mxu0
        %v625 = vpop.f32.mrf.mxu0
        %626 = vdwg.mxu0
        %vm627 = vcmp.gt.f32.partialorder %v622, 0.0
        %v628 = vmul.f32 %v622, 0.01
        %v629 = vsel %vm627, %v622, %v628
        %v630 = vld [vmem:[%s8] sm:$0x1]
        %v632 = vlaneseq
        %v633 = vshrl.u32 %v632, 7
        %v634 = vsub.s32 0, %v633
        %v635 = vrot.slane %v630, %v634
        %v637 = vmul.f32 %v629, %v635
        %vm638 = vcmask 130048
        %v639 = vsel %vm638, %v637, 0.0
        %640 = vadd.xlane.f32.xlu0 %v639
        %v641 = vpop.xlane.xlu0 %640
        %v642 = vld [vmem:[#allocation3] sm:$0x1]
        %v644 = vlaneseq
        %v645 = vshrl.u32 %v644, 7
        %v646 = vsub.s32 0, %v645
        %v647 = vrot.slane %v642, %v646
        %v649 = vadd.f32 %v641, %v647
        %v650 = vld [vmem:[%s388] sm:$0xff]
        %v651 = vmax.f32 %v649, 0.0
        %v652 = vmul.f32 %v649, %v650
        %v653 = vsub.f32 %v651, %v652
        %v654 = vand.u32 2147483647, %v649
        %v655 = vsub.f32 0.0, %v654
        %v656 = vmul.f32 %v655, 1.442695
        %v657 = vpow.pop %v656
        %vm658 = vcmp.lt.f32.partialorder %v657, 0.0001
        %v659 = vmul.f32 %v657, 0.5
        %v660 = vsub.f32 1.0, %v659
        %v661 = vmul.f32 %v657, %v660
        %v662 = vadd.f32 %v657, 1.0
        %v663 = vlog2.pop %v662
        %v664 = vmul.f32 %v663, 0.6931472
        %v665 = vsel %vm658, %v661, %v664
        %v666 = vadd.f32 %v653, %v665
        %v667 = vld [vmem:[%s10] sm:$0x1]
        %669 = vset.pattern.permute.xlu0 0
        %670 = vperm.xlu0 %669, %v666
        %v671 = vpop.permute.xlu0 %670
        %v674 = vlaneseq
        %v675 = vshrl.u32 %v674, 7
        %v676 = vsub.s32 0, %v675
        %v677 = vrot.slane %v667, %v676
        %v679 = vmul.f32 %v671, %v677
        %s680 = smul.u32 %s25, 8
        %v681 = vlaneseq
        %v682 = vshrl.u32 %v681, 7
        %v683 = vstv %s680
        %v684 = vadd.s32 %v683, %v682
        %vm685 = vcmp.lt.s32.totalorder %v684, 20
        %v686 = vsel %vm685, 1, 0
        %vm687 = vcmp.eq.s32.totalorder %v686, 1
        %v688 = vsel %vm687, %v679, 0.0
        %v689 = vld [vmem:[#allocation2] sm:$0x1]
        %vm690 = vcmask 15360
        %v691 = vsel %vm690, %v688, 0.0
        %692 = vadd.xlane.f32.xlu0 %v691
        %v693 = vpop.xlane.xlu0 %692
        %v694 = vrot.slane %v693, 4
        %v695 = vadd.f32 %v693, %v694
        %v696 = vrot.slane %v695, 2
        %v697 = vadd.f32 %v695, %v696
        %v698 = vrot.slane %v697, 1
        %v699 = vadd.f32 %v697, %v698
        %s700 = vtos %v699
        %v701 = vstv %s700
        %v702 = vadd.f32 %v689, %v701
        %vm703 = vcmask 0
        %704 = vst.msk [vmem:[#allocation2] sm:$0x1] %vm703, %v702
        %p705 = scmp.eq.s32.totalorder %s25, 2
        // Predicated region
        $region69: #{tpu_custom_call.1} parent=63 // pred_check
          %p706 = pneg %p705
        $region70: #{tpu_custom_call.1} parent=63 // pred_check_branch
          %708 = sbr.rel (%p706) target = $region72
        $region71: #{tpu_custom_call.1} parent=63 // pred_region
          %v709 = vld [vmem:[#allocation2] sm:$0x1]
          %v710 = vmul.f32 %v709, 0.025
          %711 = vst.msk [vmem:[#allocation4] sm:$0x1] %vm703, %v710
        $region72: #{tpu_custom_call.1} parent=63 // pred_fallthru
          _
        // Predicated region
        $region73: #{tpu_custom_call.1} parent=63 // pred_check
          %p712 = pneg %p279
        $region74: #{tpu_custom_call.1} parent=63 // pred_check_branch
          %714 = sbr.rel (%p712) target = $region76
        $region75: #{tpu_custom_call.1} parent=63 // pred_region
          %s716 = ssub.s32 16, 16
          %717 = vsyncadd [#allocation5], %s716
          %s719 = sshll.u32 [#allocation4], 4
          %s720 = int_to_ptr.vmem [resolvable:$true] %s719
          %722 = dma.vmem_to_hbm [thread:$0]  %s720, 16, %s11, [#allocation5]
        $region76: #{tpu_custom_call.1} parent=63 // pred_fallthru
          _
        // Predicated region
        $region77: #{tpu_custom_call.1} parent=63 // pred_check
          %p723 = pneg %p279
        $region78: #{tpu_custom_call.1} parent=63 // pred_check_branch
          %725 = sbr.rel (%p723) target = $region80
        $region79: #{tpu_custom_call.1} parent=63 // pred_region
          %726 = dma.done [#allocation5], 16
        $region80: #{tpu_custom_call.1} parent=63 // pred_fallthru
          _
      $region64: #{tpu_custom_call.1} parent=5 // pred_fallthru
        _
      %p727 = scmp.le.s32.totalorder 2, %s20
      // Predicated region
      $region81: #{tpu_custom_call.1} parent=5 // pred_check
        %p728 = pneg %p727
      $region82: #{tpu_custom_call.1} parent=5 // pred_check_branch
        %730 = sbr.rel (%p728) target = $region84
      $region83: #{tpu_custom_call.1} parent=5 // pred_region
        %s731 = ssub.s32 %s20, 2
      $region84: #{tpu_custom_call.1} parent=5 // pred_fallthru
        _
    $region6: #{tpu_custom_call.1} parent=1 // loop_footer
      %s24 = sadd.s32 1, %s20
    $region7: #{tpu_custom_call.1} parent=1 // loop_footer_branch
      %19 = sbr.rel target = $region3
    $region8: #{tpu_custom_call.1} parent=1 // loop_exit
      _
    %732 = vsyncpa [#allocation5], 1
    %s733 = scalar_lea.sflag [#allocation5], 1
    %734 = vsyncpa %s733, 1

</llo_original>
